<compile_context>
chip_gen: v5e
topology: v5e:2x2
jax: 0.10.0
libtpu: 0.0.40
codegen_flags: <defaults>
</compile_context>

<pallas_src>
import jax
import jax.numpy as jnp
from jax.experimental import pallas as pl
from jax.experimental.pallas import tpu as pltpu


def fma_kernel(w_ref, b_ref, x1_ref, x2_ref, o_ref):
    # w_ref: SMEM (2,) f32, b_ref: SMEM (1,) f32
    # x1_ref, x2_ref, o_ref: VMEM (BLOCK_ROWS, LANES) dense f32 tiles.
    w0 = w_ref[0]
    w1 = w_ref[1]
    b = b_ref[0]
    # Pure VPU fused multiply-add; scalar operands splat across the vregs.
    o_ref[...] = x1_ref[...] * w0 + x2_ref[...] * w1 + b


def _pick_block_rows(rows, lanes):
    """Rows per grid step: ~2 MiB of f32 per array, sublane-aligned, and at
    least 4 grid steps when the batch is large enough (v7x megacore)."""
    max_rows = max(8, (2 * 1024 * 1024) // (lanes * 4))
    if rows <= 8:
        return rows                          # tiny batch: one full-extent block
    target = -(-rows // 4)                   # cdiv(rows, 4) -> >=4 grid steps
    target = ((target + 7) // 8) * 8         # round up to sublane multiple of 8
    return int(min(max_rows, max(8, target)))


def tryial_model_forward(x1, x2, weight, bias):
    """x1, x2: (B, 1) float32.  weight: (1, 2), bias: (1,) — PyTorch layout."""
    B = x1.shape[0]

    # Lane width: prefer a wide 512-lane slab (unmasked wide vst); fall back
    # to 128 so that any B % 128 == 0 needs no padding at all.
    lanes = 512 if B % 512 == 0 else 128

    x1f = x1.reshape(B).astype(jnp.float32)
    x2f = x2.reshape(B).astype(jnp.float32)

    pad = (-B) % lanes
    if pad:
        # Only for non-lane-aligned batches (e.g. the tiny demo below).
        x1f = jnp.pad(x1f, (0, pad))
        x2f = jnp.pad(x2f, (0, pad))
    b_pad = B + pad
    rows = b_pad // lanes

    # Metadata-free, row-major reshape to a dense (rows, lanes) slab.
    x1r = x1f.reshape(rows, lanes)
    x2r = x2f.reshape(rows, lanes)

    block_rows = _pick_block_rows(rows, lanes)
    grid = (pl.cdiv(rows, block_rows),)

    # Weight scalars / bias go to SMEM (no (8,128)-padded VMEM tiles, no vld).
    w = weight.reshape(2).astype(jnp.float32)   # [w0, w1]
    bvec = bias.reshape(1).astype(jnp.float32)

    n_elem = rows * lanes
    cost = pl.CostEstimate(
        flops=4 * n_elem,
        transcendentals=0,
        bytes_accessed=3 * 4 * n_elem,   # read x1, x2; write out (f32)
    )

    out = pl.pallas_call(
        fma_kernel,
        out_shape=jax.ShapeDtypeStruct((rows, lanes), jnp.float32),
        grid=grid,
        in_specs=[
            pl.BlockSpec(memory_space=pltpu.MemorySpace.SMEM),    # weight (2,)
            pl.BlockSpec(memory_space=pltpu.MemorySpace.SMEM),    # bias   (1,)
            pl.BlockSpec((block_rows, lanes), lambda i: (i, 0)),  # x1 slab
            pl.BlockSpec((block_rows, lanes), lambda i: (i, 0)),  # x2 slab
        ],
        out_specs=pl.BlockSpec((block_rows, lanes), lambda i: (i, 0)),
        compiler_params=pltpu.CompilerParams(
            dimension_semantics=("parallel",),
            vmem_limit_bytes=32 * 1024 * 1024,
        ),
        cost_estimate=cost,
    )(w, bvec, x1r, x2r)

    # Back to PyTorch layout (B, 1); drop lane padding only if it was added.
    if pad:
        return out.reshape(b_pad)[:B].reshape(B, 1)
    return out.reshape(B, 1)


if __name__ == "__main__":
    key = jax.random.PRNGKey(0)
    k1, k2, kw, kb = jax.random.split(key, 4)

    B = 8
    x1 = jax.random.normal(k1, (B, 1), dtype=jnp.float32)
    x2 = jax.random.normal(k2, (B, 1), dtype=jnp.float32)

    # Deterministic parameter init for nn.Linear(2, 1): weight (1, 2), bias (1,)
    weight = jax.random.normal(kw, (1, 2), dtype=jnp.float32) * 0.5
    bias = jax.random.normal(kb, (1,), dtype=jnp.float32) * 0.1

    out = tryial_model_forward(x1, x2, weight, bias)
    out = jax.block_until_ready(out)

    # Reference check in plain JAX (same math as the PyTorch forward).
    ref = jnp.concatenate([x1, x2], axis=1) @ weight.T + bias
    assert out.shape == (B, 1), out.shape
    assert jnp.allclose(out, ref, atol=1e-5), (out, ref)

    print("KERNEL_OK")
</pallas_src>

<mosaic_0001>
module attributes {stable_mosaic.version = 11 : i64} {
  func.func @fma_kernel(%arg0: i32, %arg1: memref<2xf32, #tpu.memory_space<smem>>, %arg2: memref<1xf32, #tpu.memory_space<smem>>, %arg3: memref<1x128xf32, #tpu.memory_space<vmem>>, %arg4: memref<1x128xf32, #tpu.memory_space<vmem>>, %arg5: memref<1x128xf32, #tpu.memory_space<vmem>>) attributes {dimension_semantics = [#tpu.dimension_semantics<parallel>], iteration_bounds = array<i64: 1>, scalar_prefetch = 0 : i64, scratch_operands = 0 : i64, tpu.core_type = #tpu.core_type<tc>, window_params = [{transform_indices = @transform_0, window_bounds = array<i64: 2>}, {transform_indices = @transform_1, window_bounds = array<i64: 1>}, {transform_indices = @transform_2, window_bounds = array<i64: 1, 128>}, {transform_indices = @transform_3, window_bounds = array<i64: 1, 128>}, {transform_indices = @transform_4, window_bounds = array<i64: 1, 128>}]} {
    %c0 = arith.constant 0 : index
    %0 = memref.load %arg1[%c0] : memref<2xf32, #tpu.memory_space<smem>>
    %c1 = arith.constant 1 : index
    %1 = memref.load %arg1[%c1] : memref<2xf32, #tpu.memory_space<smem>>
    %c0_0 = arith.constant 0 : index
    %2 = memref.load %arg2[%c0_0] : memref<1xf32, #tpu.memory_space<smem>>
    %c0_1 = arith.constant 0 : index
    %c0_2 = arith.constant 0 : index
    %3 = vector.load %arg3[%c0_1, %c0_2] : memref<1x128xf32, #tpu.memory_space<vmem>>, vector<1x128xf32>
    %4 = vector.broadcast %0 : f32 to vector<1x128xf32>
    %5 = arith.mulf %3, %4 : vector<1x128xf32>
    %c0_3 = arith.constant 0 : index
    %c0_4 = arith.constant 0 : index
    %6 = vector.load %arg4[%c0_3, %c0_4] : memref<1x128xf32, #tpu.memory_space<vmem>>, vector<1x128xf32>
    %7 = vector.broadcast %1 : f32 to vector<1x128xf32>
    %8 = arith.mulf %6, %7 : vector<1x128xf32>
    %9 = arith.addf %5, %8 : vector<1x128xf32>
    %10 = vector.broadcast %2 : f32 to vector<1x128xf32>
    %11 = arith.addf %9, %10 : vector<1x128xf32>
    %c0_5 = arith.constant 0 : index
    %c0_6 = arith.constant 0 : index
    %12 = vector.load %arg5[%c0_5, %c0_6] : memref<1x128xf32, #tpu.memory_space<vmem>>, vector<1x128xf32>
    tpu.vector_store %arg5[%c0_5, %c0_6], %11 {strides = array<i32>} : memref<1x128xf32, #tpu.memory_space<vmem>>, vector<1x128xf32>,
    return
  }
  func.func @transform_0(%arg0: i32) -> i32 {
    %c0_i32 = arith.constant 0 : i32
    %c0_i32_0 = arith.constant 0 : i32
    return %c0_i32 : i32
  }
  func.func @transform_1(%arg0: i32) -> i32 {
    %c0_i32 = arith.constant 0 : i32
    %c0_i32_0 = arith.constant 0 : i32
    return %c0_i32 : i32
  }
  func.func @transform_2(%arg0: i32) -> (i32, i32) {
    %c0_i32 = arith.constant 0 : i32
    %c0_i32_0 = arith.constant 0 : i32
    return %arg0, %c0_i32 : i32, i32
  }
  func.func @transform_3(%arg0: i32) -> (i32, i32) {
    %c0_i32 = arith.constant 0 : i32
    %c0_i32_0 = arith.constant 0 : i32
    return %arg0, %c0_i32 : i32, i32
  }
  func.func @transform_4(%arg0: i32) -> (i32, i32) {
    %c0_i32 = arith.constant 0 : i32
    %c0_i32_0 = arith.constant 0 : i32
    return %arg0, %c0_i32 : i32, i32
  }
}

</mosaic_0001>

<llo_original>
// kernel: tpu_custom_call.1
$region0: #{tpu_custom_call.1}
  #allocation0 [shape = 'u32[]', space=smem, size = 0x4, offset = 0x4, fixed_abs, tag = 'smem constant byte address 0x4 - core index']
  #allocation1 [shape = 'u32[72,128]{1,0:T(1,128)}', space=vmem, size = 0x9000, scoped, tag = 'internal scratch']
  #allocation2 [shape = 'f32[1]{0:T(128)S(6)}', space=smem, size = 0x200, scoped, tag = 'scoped memory for tpu_custom_call.1']
  %s0 = inlined_call_operand.vmem [shape: f32[2], index: 0, kind: input, shape index: {}]
  %s1 = inlined_call_operand.<no memory space> [shape: f32[1], index: 1, kind: input, shape index: {}]
  %s2 = inlined_call_operand.vmem [shape: f32[1,128], index: 2, kind: input, shape index: {}]
  %s3 = inlined_call_operand.vmem [shape: f32[1,128], index: 3, kind: input, shape index: {}]
  %s4 = inlined_call_operand.hbm [shape: f32[1,128], index: 4, kind: output, shape index: {}]
  %s5 = sld [smem:[#allocation0]]
  $region30: #{tpu_custom_call.1} parent=0
    _
  %s7 = ssub.s32 1, %s5
  %s8 = scalar_select 0, %s7, %s5
  %9 = sst [smem:[#allocation2]] %s1
  $region1: #{tpu_custom_call.1} parent=0
    #allocation3 [shape = 'u8[512]{0}', space=smem, size = 0x200, scoped, tag = 'input window, operand 0, single buffered']
    #allocation4 [shape = 's32[1]{0}', space=sflag, size = 0x4, scoped, tag = 'scoped memory for tpu_custom_call.1']
    #allocation5 [shape = 's32[1]{0}', space=sflag, size = 0x4, scoped, tag = 'scoped memory for tpu_custom_call.1']
    #allocation6 [shape = 'u8[512]{0}', space=vmem, size = 0x400, scoped, tag = 'output window, operand 0, single buffered']
    %10 = vsyncpa [#allocation5], 0
    %11 = vsyncpa [#allocation4], 0
    // Predicated region
    $region2: #{tpu_custom_call.1} parent=1 // pred_check
      _
    $region3: #{tpu_custom_call.1} parent=1 // pred_check_branch
      %13 = sbr.rel (0) target = $region5
    $region4: #{tpu_custom_call.1} parent=1 // pred_region
      %15 = vsyncadd [#allocation5], 0
      %s17 = sshll.u32 %s0, 4
      %s18 = int_to_ptr.vmem [resolvable:$true] %s17
      %20 = dma.vmem_to_smem %s18, 16, [#allocation3], [#allocation5]
    $region5: #{tpu_custom_call.1} parent=1 // pred_fallthru
      _
    // Predicated region
    $region6: #{tpu_custom_call.1} parent=1 // pred_check
      _
    $region7: #{tpu_custom_call.1} parent=1 // pred_check_branch
      %22 = sbr.rel (0) target = $region9
    $region8: #{tpu_custom_call.1} parent=1 // pred_region
      _
    $region9: #{tpu_custom_call.1} parent=1 // pred_fallthru
      _
    // Predicated region
    $region10: #{tpu_custom_call.1} parent=1 // pred_check
      _
    $region11: #{tpu_custom_call.1} parent=1 // pred_check_branch
      %24 = sbr.rel (0) target = $region13
    $region12: #{tpu_custom_call.1} parent=1 // pred_region
      _
    $region13: #{tpu_custom_call.1} parent=1 // pred_fallthru
      _
    // Predicated region
    $region14: #{tpu_custom_call.1} parent=1 // pred_check
      _
    $region15: #{tpu_custom_call.1} parent=1 // pred_check_branch
      %26 = sbr.rel (0) target = $region17
    $region16: #{tpu_custom_call.1} parent=1 // pred_region
      _
    $region17: #{tpu_custom_call.1} parent=1 // pred_fallthru
      _
    // Predicated region
    $region18: #{tpu_custom_call.1} parent=1 // pred_check
      _
    $region19: #{tpu_custom_call.1} parent=1 // pred_check_branch
      %28 = sbr.rel (0) target = $region21
    $region20: #{tpu_custom_call.1} parent=1 // pred_region
      %30 = dma.done [#allocation5], 16
    $region21: #{tpu_custom_call.1} parent=1 // pred_fallthru
      _
    %31 = sfence
    %s32 = sld [smem:[#allocation3]]
    %s33 = sld [smem:[#allocation3 + $0x1]]
    %s34 = sld [smem:[#allocation2]]
    %v35 = vld [vmem:[%s2] sm:$0x1]
    %v36 = vstv %s32
    %v37 = vmul.f32 %v35, %v36
    %v38 = vld [vmem:[%s3] sm:$0x1]
    %v39 = vstv %s33
    %v40 = vmul.f32 %v38, %v39
    %v41 = vadd.f32 %v37, %v40
    %v42 = vstv %s34
    %v43 = vadd.f32 %v41, %v42
    %44 = vst [vmem:[#allocation6] sm:$0x1] %v43
    // Predicated region
    $region22: #{tpu_custom_call.1} parent=1 // pred_check
      _
    $region23: #{tpu_custom_call.1} parent=1 // pred_check_branch
      %46 = sbr.rel (0) target = $region25
    $region24: #{tpu_custom_call.1} parent=1 // pred_region
      %48 = vsyncadd [#allocation4], 0
      %s50 = sshll.u32 [#allocation6], 4
      %s51 = int_to_ptr.vmem [resolvable:$true] %s50
      %s52 = sshll.u32 %s4, 4
      %s53 = int_to_ptr.hbm [resolvable:$true] %s52
      %55 = dma.vmem_to_hbm [thread:$0]  %s51, 16, %s53, [#allocation4]
    $region25: #{tpu_custom_call.1} parent=1 // pred_fallthru
      _
    // Predicated region
    $region26: #{tpu_custom_call.1} parent=1 // pred_check
      _
    $region27: #{tpu_custom_call.1} parent=1 // pred_check_branch
      %57 = sbr.rel (0) target = $region29
    $region28: #{tpu_custom_call.1} parent=1 // pred_region
      %59 = dma.done [#allocation4], 16
    $region29: #{tpu_custom_call.1} parent=1 // pred_fallthru
      _
    %60 = vsyncpa [#allocation4], 1
    %61 = vsyncpa [#allocation5], 1

</llo_original>
